<compile_context>
chip_gen: v5e
topology: v5e:2x2
jax: 0.10.0
libtpu: 0.0.40
codegen_flags: <defaults>
</compile_context>

<pallas_src>
import jax
import jax.numpy as jnp
from jax import lax
from jax.experimental import pallas as pl
from jax.experimental.pallas import tpu as pltpu


def _cam_attn_kernel(x_ref, attn_ref, energy_acc):
    """Accumulate energy = x @ x^T over N tiles; finalize softmax on last tile."""
    k = pl.program_id(1)

    @pl.when(k == 0)
    def _():
        energy_acc[...] = jnp.zeros_like(energy_acc)

    x = x_ref[0]  # (C, tn), input dtype (MXU accumulates in f32)
    # Contract over the N (lane) axis of both operands: x @ x^T without an
    # explicit transpose of x.
    energy_acc[...] += lax.dot_general(
        x, x,
        dimension_numbers=(((1,), (1,)), ((), ())),
        preferred_element_type=jnp.float32,
    )

    @pl.when(k == pl.num_programs(1) - 1)
    def _():
        energy = energy_acc[...]
        # softmax(rowmax(E) - E) == softmax(-E); stable form uses the row min.
        row_min = jnp.min(energy, axis=-1, keepdims=True)
        e = jnp.exp(row_min - energy)
        denom = jnp.sum(e, axis=-1, keepdims=True)
        # Runs once per batch element on a (C, C) tile -> exact divide is
        # negligible and keeps a tight match with the f32 reference.
        attn_ref[0] = (e / denom).astype(attn_ref.dtype)


def _cam_apply_kernel(gamma_ref, attn_ref, x_ref, o_ref):
    """out_tile = gamma * (attn @ x_tile) + x_tile."""
    x = x_ref[0]                            # (C, tn), input dtype
    attn = attn_ref[0].astype(x.dtype)      # feed the MXU at input precision
    out = lax.dot_general(
        attn, x,
        dimension_numbers=(((1,), (0,)), ((), ())),
        preferred_element_type=jnp.float32,
    )                                       # (C, tn), f32 accumulation
    gamma = gamma_ref[0]
    o_ref[0] = (gamma * out + x.astype(jnp.float32)).astype(o_ref.dtype)


def _pick_tile(n_pad, max_tile=512):
    t = min(n_pad, max_tile)
    while n_pad % t:
        t -= 128
    return t


def cam_module(x, gamma, *, max_tile=512):
    """x: (B, C, H, W); gamma: (1,) f32.  Returns gamma * (attn @ x) + x."""
    B, C, H, W = x.shape
    N = H * W
    x_flat = x.reshape(B, C, N)

    # Lane-dense padding of the spatial axis (zeros are exact for this op).
    n_pad = ((N + 127) // 128) * 128
    if n_pad != N:
        x_flat = jnp.pad(x_flat, ((0, 0), (0, 0), (0, n_pad - N)))
    tn = _pick_tile(n_pad, max_tile)
    n_tiles = n_pad // tn

    # Pass 1: per-batch channel attention, (B, C, C) in f32.
    attn = pl.pallas_call(
        _cam_attn_kernel,
        out_shape=jax.ShapeDtypeStruct((B, C, C), jnp.float32),
        grid_spec=pltpu.PrefetchScalarGridSpec(
            num_scalar_prefetch=0,
            grid=(B, n_tiles),
            in_specs=[
                pl.BlockSpec((1, C, tn), lambda b, k: (b, 0, k)),       # x
            ],
            out_specs=pl.BlockSpec((1, C, C), lambda b, k: (b, 0, 0)),  # attn
            scratch_shapes=[pltpu.VMEM((C, C), jnp.float32)],
        ),
        compiler_params=pltpu.CompilerParams(
            dimension_semantics=("parallel", "arbitrary")),
    )(x_flat)

    # Pass 2: apply attention + residual, tile by tile over N.
    out_flat = pl.pallas_call(
        _cam_apply_kernel,
        out_shape=jax.ShapeDtypeStruct((B, C, n_pad), x.dtype),
        grid_spec=pltpu.PrefetchScalarGridSpec(
            num_scalar_prefetch=0,
            grid=(B, n_tiles),
            in_specs=[
                pl.BlockSpec(memory_space=pltpu.MemorySpace.SMEM),      # gamma
                pl.BlockSpec((1, C, C), lambda b, k: (b, 0, 0)),        # attn
                pl.BlockSpec((1, C, tn), lambda b, k: (b, 0, k)),       # x
            ],
            out_specs=pl.BlockSpec((1, C, tn), lambda b, k: (b, 0, k)),
        ),
        compiler_params=pltpu.CompilerParams(
            dimension_semantics=("parallel", "parallel")),
        # NOTE: input_output_aliases={2: 0} (alias x -> out) would save one
        # full-size HBM buffer and is safe (each x tile is read before its
        # output tile is written); left off so the wrapper does not donate the
        # caller's x.
    )(gamma, attn, x_flat)

    if n_pad != N:
        out_flat = out_flat[:, :, :N]
    return out_flat.reshape(B, C, H, W)


def cam_reference(x, gamma):
    B, C, H, W = x.shape
    xf = x.reshape(B, C, H * W).astype(jnp.float32)
    energy = jnp.einsum("bcn,bdn->bcd", xf, xf)
    energy_new = jnp.max(energy, axis=-1, keepdims=True) - energy
    attn = jax.nn.softmax(energy_new, axis=-1)
    out = jnp.einsum("bcd,bdn->bcn", attn, xf)
    return (gamma[0] * out + xf).reshape(B, C, H, W).astype(x.dtype)


if __name__ == "__main__":
    key = jax.random.PRNGKey(0)
    B, C, H, W = 2, 4, 16, 16
    x = jax.random.normal(key, (B, C, H, W), dtype=jnp.float32)

    # nn.Parameter(torch.zeros(1)) starts at 0; use a nonzero gamma so the
    # attention path is actually exercised by the check.
    gamma = jnp.array([0.5], dtype=jnp.float32)

    out = cam_module(x, gamma)
    jax.block_until_ready(out)

    ref = cam_reference(x, gamma)
    assert jnp.allclose(out, ref, atol=1e-4, rtol=1e-4), "mismatch vs reference"

    print("KERNEL_OK")
</pallas_src>

<mosaic_0001>
module attributes {stable_mosaic.version = 11 : i64} {
  func.func @_cam_attn_kernel(%arg0: i32, %arg1: i32, %arg2: memref<1x4x256xf32, #tpu.memory_space<vmem>>, %arg3: memref<1x4x4xf32, #tpu.memory_space<vmem>>, %arg4: memref<4x4xf32, #tpu.memory_space<vmem>>) attributes {dimension_semantics = [#tpu.dimension_semantics<parallel>, #tpu.dimension_semantics<arbitrary>], iteration_bounds = array<i64: 2, 1>, scalar_prefetch = 0 : i64, scratch_operands = 1 : i64, tpu.core_type = #tpu.core_type<tc>, window_params = [{transform_indices = @transform_0, window_bounds = array<i64: 1, 4, 256>}, {transform_indices = @transform_1, window_bounds = array<i64: 1, 4, 4>}]} {
    %c0_i32 = arith.constant 0 : i32
    %0 = arith.cmpi eq, %arg1, %c0_i32 : i32
    %1 = arith.extui %0 : i1 to i32
    %c0_i32_0 = arith.constant 0 : i32
    %2 = arith.cmpi ne, %1, %c0_i32_0 : i32
    scf.if %2 {
      %cst_9 = arith.constant 0.000000e+00 : f32
      %12 = vector.broadcast %cst_9 : f32 to vector<4x4xf32>
      %c0_10 = arith.constant 0 : index
      %c0_11 = arith.constant 0 : index
      %13 = vector.load %arg4[%c0_10, %c0_11] : memref<4x4xf32, #tpu.memory_space<vmem>>, vector<4x4xf32>
      tpu.vector_store %arg4[%c0_10, %c0_11], %12 {strides = array<i32>} : memref<4x4xf32, #tpu.memory_space<vmem>>, vector<4x4xf32>,
    } else {
    }
    %c0 = arith.constant 0 : index
    %c0_1 = arith.constant 0 : index
    %c0_2 = arith.constant 0 : index
    %3 = vector.load %arg2[%c0, %c0_1, %c0_2] : memref<1x4x256xf32, #tpu.memory_space<vmem>>, vector<1x4x256xf32>
    %4 = vector.shape_cast %3 : vector<1x4x256xf32> to vector<4x256xf32>
    %c0_3 = arith.constant 0 : index
    %c0_4 = arith.constant 0 : index
    %5 = vector.load %arg4[%c0_3, %c0_4] : memref<4x4xf32, #tpu.memory_space<vmem>>, vector<4x4xf32>
    %cst = arith.constant dense<0.000000e+00> : vector<4x4xf32>
    %6 = tpu.matmul %4, %4, %cst {dimension_numbers = #tpu.dot_dimension_numbers<[1], [1], [0], [0], [0, 0, 1, 0], [], []>} : vector<4x256xf32>, vector<4x256xf32>, vector<4x4xf32> -> vector<4x4xf32>
    %7 = arith.addf %5, %6 : vector<4x4xf32>
    %c0_5 = arith.constant 0 : index
    %c0_6 = arith.constant 0 : index
    %8 = vector.load %arg4[%c0_5, %c0_6] : memref<4x4xf32, #tpu.memory_space<vmem>>, vector<4x4xf32>
    tpu.vector_store %arg4[%c0_5, %c0_6], %7 {strides = array<i32>} : memref<4x4xf32, #tpu.memory_space<vmem>>, vector<4x4xf32>,
    %c0_i32_7 = arith.constant 0 : i32
    %9 = arith.cmpi eq, %arg1, %c0_i32_7 : i32
    %10 = arith.extui %9 : i1 to i32
    %c0_i32_8 = arith.constant 0 : i32
    %11 = arith.cmpi ne, %10, %c0_i32_8 : i32
    scf.if %11 {
      %c0_9 = arith.constant 0 : index
      %c0_10 = arith.constant 0 : index
      %12 = vector.load %arg4[%c0_9, %c0_10] : memref<4x4xf32, #tpu.memory_space<vmem>>, vector<4x4xf32>
      %cst_11 = arith.constant dense<0x7F800000> : vector<4xf32>
      %13 = vector.multi_reduction <minimumf>, %12, %cst_11 [1] : vector<4x4xf32> to vector<4xf32>
      %14 = vector.shape_cast %13 : vector<4xf32> to vector<4x1xf32>
      %15 = vector.broadcast %14 : vector<4x1xf32> to vector<4x4xf32>
      %16 = arith.subf %15, %12 : vector<4x4xf32>
      %17 = math.exp %16 : vector<4x4xf32>
      %cst_12 = arith.constant dense<0.000000e+00> : vector<4xf32>
      %18 = vector.multi_reduction <add>, %17, %cst_12 [1] : vector<4x4xf32> to vector<4xf32>
      %19 = vector.shape_cast %18 : vector<4xf32> to vector<4x1xf32>
      %20 = vector.broadcast %19 : vector<4x1xf32> to vector<4x4xf32>
      %21 = arith.divf %17, %20 : vector<4x4xf32>
      %c0_13 = arith.constant 0 : index
      %c0_14 = arith.constant 0 : index
      %c0_15 = arith.constant 0 : index
      %22 = vector.load %arg3[%c0_13, %c0_14, %c0_15] : memref<1x4x4xf32, #tpu.memory_space<vmem>>, vector<1x4x4xf32>
      %23 = vector.shape_cast %22 : vector<1x4x4xf32> to vector<4x4xf32>
      %24 = vector.shape_cast %21 : vector<4x4xf32> to vector<1x4x4xf32>
      tpu.vector_store %arg3[%c0_13, %c0_14, %c0_15], %24 {strides = array<i32>} : memref<1x4x4xf32, #tpu.memory_space<vmem>>, vector<1x4x4xf32>,
    } else {
    }
    return
  }
  func.func @transform_0(%arg0: i32, %arg1: i32) -> (i32, i32, i32) {
    %c0_i32 = arith.constant 0 : i32
    %c0_i32_0 = arith.constant 0 : i32
    return %arg0, %c0_i32, %arg1 : i32, i32, i32
  }
  func.func @transform_1(%arg0: i32, %arg1: i32) -> (i32, i32, i32) {
    %c0_i32 = arith.constant 0 : i32
    %c0_i32_0 = arith.constant 0 : i32
    %c0_i32_1 = arith.constant 0 : i32
    return %arg0, %c0_i32, %c0_i32_0 : i32, i32, i32
  }
}

</mosaic_0001>

<llo_original>
// kernel: tpu_custom_call.1
$region0: #{tpu_custom_call.1}
  #allocation0 [shape = 'u32[]', space=smem, size = 0x4, offset = 0x4, fixed_abs, tag = 'smem constant byte address 0x4 - core index']
  #allocation1 [shape = 'u32[72,128]{1,0:T(1,128)}', space=vmem, size = 0x9000, scoped, tag = 'internal scratch']
  #allocation2 [shape = 'f32[4,4]{1,0:T(4,128)}', space=vmem, size = 0x800, scoped, tag = 'scratch operand']
  %s0 = inlined_call_operand.hbm [shape: f32[2,4,256], index: 0, kind: input, shape index: {}]
  %s1 = inlined_call_operand.hbm [shape: f32[2,4,4], index: 1, kind: output, shape index: {}]
  %s2 = sld [smem:[#allocation0]]
  $region49: #{tpu_custom_call.1} parent=0
    _
  %s4 = ssub.s32 1, %s2
  %s5 = scalar_select 0, %s4, %s2
  $region1: #{tpu_custom_call.1} parent=0
    #allocation3 [shape = 'u8[8192]{0}', space=vmem, size = 0x2000, scoped, tag = 'input window, operand 0']
    #allocation4 [shape = 's32[2]{0}', space=sflag, size = 0x8, scoped, tag = 'scoped memory for tpu_custom_call.1']
    #allocation5 [shape = 's32[2]{0}', space=sflag, size = 0x8, scoped, tag = 'scoped memory for tpu_custom_call.1']
    #allocation6 [shape = 'u8[4096]{0}', space=vmem, size = 0x1000, scoped, tag = 'output window, operand 0']
    %6 = vsyncpa [#allocation4], 0
    %s7 = scalar_lea.sflag [#allocation4], 1
    %8 = vsyncpa %s7, 0
    %9 = vsyncpa [#allocation5], 0
    %s10 = scalar_lea.sflag [#allocation5], 1
    %11 = vsyncpa %s10, 0
    loop: start=0, step=1, limit=4
    $region2: #{tpu_custom_call.1} parent=1 // loop_pre_header
      _
    $region3: #{tpu_custom_call.1} parent=1 // loop_header
      %s13 = sphi 0, %s17
      %p14 = scmp.ge.s32.totalorder %s13, 4
      %s20 = sphi 0, %s32
      %s21 = sphi 0, %s28
      %s22 = sphi 0, %s20
      %s23 = sphi 0, %s21
      %s24 = sphi 0, %s22
      %s25 = sphi 0, %s23
      %s37 = sphi 0, %s39
      %s40 = sphi 0, %s37
      %s41 = sphi 0, %s40
      %s57 = sphi 0, %s41
      %s63 = sphi 0, %s65
      %s66 = sphi 0, %s63
      %s67 = sphi 0, %s66
      %s83 = sphi 0, %s67
    $region4: #{tpu_custom_call.1} parent=1 // loop_header_branch
      %16 = sbr.rel (%p14) target = $region8
    $region5: #{tpu_custom_call.1} parent=1 // loop_body
      %s18 = ssub.s32 %s13, 1
      %s19 = ssub.s32 %s13, 2
      %s26 = sadd.s32 1, %s21
      %p27 = scmp.ge.s32.totalorder %s26, 1
      %s28 = scalar_select %p27, 0, %s26
      %s29 = sadd.s32 1, %s20
      %s30 = scalar_select %p27, %s29, %s20
      %p31 = scmp.ge.s32.totalorder %s30, 2
      %s32 = scalar_select %p31, 0, %s30
      %s33 = ssub.s32 %s20, %s32
      %s34 = ssub.s32 %s21, %s28
      %s35 = sor.u32 %s33, %s34
      %p36 = scmp.eq.s32.totalorder %s35, 0
      %s38 = sadd.s32 %s37, 1
      %s39 = scalar_select %p36, %s37, %s38
      %p42 = pneg %p36
      %p43 = scmp.eq.s32.totalorder %s13, 1
      %p44 = por %p42, %p43
      %p45 = scmp.ne.s32.totalorder %s37, %s40
      %p46 = scmp.eq.s32.totalorder %s13, 0
      %p47 = por %p45, %p46
      %p48 = scmp.ne.s32.totalorder %s37, %s40
      %p49 = scmp.eq.s32.totalorder %s18, 1
      %p50 = por %p48, %p49
      %p51 = scmp.ne.s32.totalorder %s40, %s41
      %p52 = scmp.eq.s32.totalorder %s18, 0
      %p53 = por %p51, %p52
      %p54 = scmp.ne.s32.totalorder %s40, %s41
      %p55 = scmp.eq.s32.totalorder %s19, 1
      %p56 = por %p54, %p55
      %p58 = scmp.ne.s32.totalorder %s41, %s57
      %p59 = scmp.eq.s32.totalorder %s19, 0
      %p60 = por %p58, %p59
      %s61 = ssub.s32 %s20, %s32
      %p62 = scmp.eq.s32.totalorder %s61, 0
      %s64 = sadd.s32 %s63, 1
      %s65 = scalar_select %p62, %s63, %s64
      %p68 = pneg %p62
      %p69 = scmp.eq.s32.totalorder %s13, 1
      %p70 = por %p68, %p69
      %p71 = scmp.ne.s32.totalorder %s63, %s66
      %p72 = scmp.eq.s32.totalorder %s13, 0
      %p73 = por %p71, %p72
      %p74 = scmp.ne.s32.totalorder %s63, %s66
      %p75 = scmp.eq.s32.totalorder %s18, 1
      %p76 = por %p74, %p75
      %p77 = scmp.ne.s32.totalorder %s66, %s67
      %p78 = scmp.eq.s32.totalorder %s18, 0
      %p79 = por %p77, %p78
      %p80 = scmp.ne.s32.totalorder %s66, %s67
      %p81 = scmp.eq.s32.totalorder %s19, 1
      %p82 = por %p80, %p81
      %p84 = scmp.ne.s32.totalorder %s67, %s83
      %p85 = scmp.eq.s32.totalorder %s19, 0
      %p86 = por %p84, %p85
      %p87 = scmp.le.s32.totalorder 1, %s13
      %p88 = scmp.lt.s32.totalorder %s13, 3
      %p89 = pnand %p87, %p88
      %p90 = pneg %p89
      // Predicated region
      $region9: #{tpu_custom_call.1} parent=5 // pred_check
        _
      $region10: #{tpu_custom_call.1} parent=5 // pred_check_branch
        %92 = sbr.rel (%p89) target = $region12
      $region11: #{tpu_custom_call.1} parent=5 // pred_region
        %s93 = ssub.s32 %s13, 1
      $region12: #{tpu_custom_call.1} parent=5 // pred_fallthru
        _
      %p94 = scmp.lt.s32.totalorder %s13, 2
      // Predicated region
      $region13: #{tpu_custom_call.1} parent=5 // pred_check
        %p95 = pneg %p94
      $region14: #{tpu_custom_call.1} parent=5 // pred_check_branch
        %97 = sbr.rel (%p95) target = $region16
      $region15: #{tpu_custom_call.1} parent=5 // pred_region
        // Predicated region
        $region17: #{tpu_custom_call.1} parent=15 // pred_check
          %p98 = pneg %p47
        $region18: #{tpu_custom_call.1} parent=15 // pred_check_branch
          %100 = sbr.rel (%p98) target = $region20
        $region19: #{tpu_custom_call.1} parent=15 // pred_region
          %s101 = sand.u32 %s37, 1
          %s102 = scalar_lea.sflag [#allocation4], %s101
          %s103 = sand.u32 %s37, 1
          %s104 = smul.addr %s103, 8
          %s105 = scalar_lea.vmem [#allocation3], %s104
          %s106 = smul.u32 2, %s21
          %108 = vsyncadd %s102, 0
          %s109 = smul.addr %s20, 2
          %s110 = sadd.s32 %s106, %s109
          %s111 = smul.addr %s110, 4
          %s112 = scalar_lea.hbm %s0, %s111
          %s114 = sshll.u32 %s112, 4
          %s115 = int_to_ptr.hbm [resolvable:$true] %s114
          %s116 = sshll.u32 %s105, 4
          %s117 = int_to_ptr.vmem [resolvable:$true] %s116
          %119 = dma.hbm_to_vmem [thread:$0]  %s115, 128, %s117, %s102
        $region20: #{tpu_custom_call.1} parent=15 // pred_fallthru
          _
      $region16: #{tpu_custom_call.1} parent=5 // pred_fallthru
        _
      %p120 = scmp.le.s32.totalorder 1, %s13
      %p121 = scmp.lt.s32.totalorder %s13, 3
      %p122 = pnand %p120, %p121
      %p123 = pneg %p122
      // Predicated region
      $region21: #{tpu_custom_call.1} parent=5 // pred_check
        _
      $region22: #{tpu_custom_call.1} parent=5 // pred_check_branch
        %125 = sbr.rel (%p122) target = $region24
      $region23: #{tpu_custom_call.1} parent=5 // pred_region
        %s126 = ssub.s32 %s13, 1
        %s127 = sand.u32 %s40, 1
        %s128 = scalar_lea.sflag [#allocation4], %s127
        %s129 = sand.u32 %s40, 1
        %s130 = smul.addr %s129, 8
        %s131 = scalar_lea.vmem [#allocation3], %s130
        // Predicated region
        $region25: #{tpu_custom_call.1} parent=23 // pred_check
          %p132 = pneg %p53
        $region26: #{tpu_custom_call.1} parent=23 // pred_check_branch
          %134 = sbr.rel (%p132) target = $region28
        $region27: #{tpu_custom_call.1} parent=23 // pred_region
          %136 = dma.done %s128, 128
        $region28: #{tpu_custom_call.1} parent=23 // pred_fallthru
          _
        %s137 = sand.u32 %s40, 1
        %s138 = scalar_lea.sflag [#allocation4], %s137
        %s139 = sand.u32 %s40, 1
        %s140 = smul.addr %s139, 8
        %s141 = scalar_lea.vmem [#allocation3], %s140
        %p142 = pneg %p53
        %p143 = pneg %p50
        %p144 = pneg %p79
        %p145 = pneg %p76
        %s146 = sand.u32 %s66, 1
        %s147 = scalar_lea.sflag [#allocation5], %s146
        %s148 = sand.u32 %s66, 1
        %s149 = smul.addr %s148, 4
        %s150 = scalar_lea.vmem [#allocation6], %s149
        %s151 = smul.u32 2, %s23
        %p152 = scmp.eq.s32.totalorder %s23, 0
        // Predicated region
        $region29: #{tpu_custom_call.1} parent=23 // pred_check
          %p153 = pneg %p152
        $region30: #{tpu_custom_call.1} parent=23 // pred_check_branch
          %155 = sbr.rel (%p153) target = $region32
        $region31: #{tpu_custom_call.1} parent=23 // pred_region
          %vm156 = vcmask 27648
          %157 = vst.msk [vmem:[#allocation2] sm:$0xf] %vm156, 0.0
        $region32: #{tpu_custom_call.1} parent=23 // pred_fallthru
          _
        %v158 = vld [vmem:[%s131] sm:$0xff]
        %v159 = vld [vmem:[#allocation2] sm:$0xf]
        %161 = vst [vmem:[#allocation1] ss:$2 sm:$0xff] %v158
        %v162 = vld.sshfl [vmem:[#allocation1] sm:$0xff pattern:$0x75316420]
        %v163 = vld.sshfl [vmem:[#allocation1 + $0x8] sm:$0xff pattern:$0x75316420]
        %166 = vst [vmem:[#allocation1] ss:$2 sm:$0xff] %v158
        %v167 = vld.sshfl [vmem:[#allocation1] sm:$0xff pattern:$0x75316420]
        %v168 = vld.sshfl [vmem:[#allocation1 + $0x8] sm:$0xff pattern:$0x75316420]
        %171 = vmatpush.xpose.msra.mxu0 0.0
        %172 = vmatpush.xpose.msra.mxu0 0.0
        %173 = vmatpush.xpose.msra.mxu0 0.0
        %174 = vmatpush.xpose.msra.mxu0 0.0
        %175 = vmatpush.xpose.msra.mxu0 0.0
        %176 = vmatpush.xpose.msra.mxu0 0.0
        %177 = vmatpush.xpose.msra.mxu0 0.0
        %178 = vmatpush.xpose.msra.mxu0 0.0
        %179 = vmatpush.xpose.msra.mxu0 0.0
        %180 = vmatpush.xpose.msra.mxu0 0.0
        %181 = vmatpush.xpose.msra.mxu0 0.0
        %182 = vmatpush.xpose.msra.mxu0 0.0
        %183 = vmatpush.xpose.msra.mxu0 0.0
        %184 = vmatpush.xpose.msra.mxu0 0.0
        %185 = vmatpush.xpose.msra.mxu0 0.0
        %186 = vmatpush.xpose.msra.mxu0 %v167
        %187 = vmatmul.f32.gmra.mxu0 %v162
        %v188 = vpop.f32.mrf.mxu0
        %v189 = vadd.f32 0.0, %v188
        %190 = vdwg.mxu0
        %191 = vmatpush.xpose.msra.mxu0 0.0
        %192 = vmatpush.xpose.msra.mxu0 0.0
        %193 = vmatpush.xpose.msra.mxu0 0.0
        %194 = vmatpush.xpose.msra.mxu0 0.0
        %195 = vmatpush.xpose.msra.mxu0 0.0
        %196 = vmatpush.xpose.msra.mxu0 0.0
        %197 = vmatpush.xpose.msra.mxu0 0.0
        %198 = vmatpush.xpose.msra.mxu0 0.0
        %199 = vmatpush.xpose.msra.mxu0 0.0
        %200 = vmatpush.xpose.msra.mxu0 0.0
        %201 = vmatpush.xpose.msra.mxu0 0.0
        %202 = vmatpush.xpose.msra.mxu0 0.0
        %203 = vmatpush.xpose.msra.mxu0 0.0
        %204 = vmatpush.xpose.msra.mxu0 0.0
        %205 = vmatpush.xpose.msra.mxu0 0.0
        %206 = vmatpush.xpose.msra.mxu0 %v168
        %207 = vmatmul.f32.gmra.mxu0 %v163
        %v208 = vpop.f32.mrf.mxu0
        %v209 = vadd.f32 %v189, %v208
        %210 = vdwg.mxu0
        %v211 = vadd.f32 %v159, %v209
        %vm212 = vcmask 27648
        %213 = vst.msk [vmem:[#allocation2] sm:$0xf] %vm212, %v211
        // Predicated region
        $region33: #{tpu_custom_call.1} parent=23 // pred_check
          %p214 = pneg %p152
        $region34: #{tpu_custom_call.1} parent=23 // pred_check_branch
          %216 = sbr.rel (%p214) target = $region36
        $region35: #{tpu_custom_call.1} parent=23 // pred_region
          %v217 = vld [vmem:[#allocation2] sm:$0xf]
          %v218 = vsel %vm212, %v217, inf
          %219 = vmin.xlane.f32.xlu0 %v218
          %v220 = vpop.xlane.xlu0 %219
          %v221 = vsub.f32 %v220, %v217
          %v222 = vmul.f32 %v221, 1.442695
          %v223 = vpow.pop %v222
          %v224 = vsel %vm212, %v223, 0.0
          %225 = vadd.xlane.f32.xlu0 %v224
          %v226 = vpop.xlane.xlu0 %225
          %v227 = vrcp.pop %v226
          %v228 = vmul.f32 %v226, %v227
          %v229 = vsub.f32 1.0, %v228
          %v230 = vmul.f32 %v227, %v229
          %v231 = vadd.f32 %v227, %v230
          %vm232 = vweird.f32 %v226
          %vm233 = vweird.f32 %v227
          %vm234 = vmor %vm232, %vm233
          %v235 = vsel %vm234, %v227, %v231
          %v236 = vand.u32 2147483647, %v226
          %vm237 = vcmp.eq.f32.partialorder %v236, 8.507059e+37
          %v238 = vand.u32 %v226, 2147483648
          %v239 = vor.u32 1.1754944e-38, %v238
          %v240 = vsel %vm237, %v239, %v235
          %v241 = vmul.f32 %v223, %v240
          %242 = vst.msk [vmem:[%s150] sm:$0xf] %vm212, %v241
        $region36: #{tpu_custom_call.1} parent=23 // pred_fallthru
          _
        %s243 = sand.u32 %s66, 1
        %s244 = scalar_lea.sflag [#allocation5], %s243
        %s245 = sand.u32 %s66, 1
        %s246 = smul.addr %s245, 4
        %s247 = scalar_lea.vmem [#allocation6], %s246
        // Predicated region
        $region37: #{tpu_custom_call.1} parent=23 // pred_check
          %p248 = pneg %p76
        $region38: #{tpu_custom_call.1} parent=23 // pred_check_branch
          %250 = sbr.rel (%p248) target = $region40
        $region39: #{tpu_custom_call.1} parent=23 // pred_region
          %252 = vsyncadd %s244, 0
          %s253 = smul.addr %s22, 4
          %s254 = scalar_lea.hbm %s1, %s253
          %s256 = sshll.u32 %s247, 4
          %s257 = int_to_ptr.vmem [resolvable:$true] %s256
          %s258 = sshll.u32 %s254, 4
          %s259 = int_to_ptr.hbm [resolvable:$true] %s258
          %261 = dma.vmem_to_hbm [thread:$0]  %s257, 64, %s259, %s244
        $region40: #{tpu_custom_call.1} parent=23 // pred_fallthru
          _
      $region24: #{tpu_custom_call.1} parent=5 // pred_fallthru
        _
      %p262 = scmp.le.s32.totalorder 2, %s13
      // Predicated region
      $region41: #{tpu_custom_call.1} parent=5 // pred_check
        %p263 = pneg %p262
      $region42: #{tpu_custom_call.1} parent=5 // pred_check_branch
        %265 = sbr.rel (%p263) target = $region44
      $region43: #{tpu_custom_call.1} parent=5 // pred_region
        %s266 = ssub.s32 %s13, 2
        // Predicated region
        $region45: #{tpu_custom_call.1} parent=43 // pred_check
          %p267 = pneg %p82
        $region46: #{tpu_custom_call.1} parent=43 // pred_check_branch
          %269 = sbr.rel (%p267) target = $region48
        $region47: #{tpu_custom_call.1} parent=43 // pred_region
          %s270 = sand.u32 %s67, 1
          %s271 = scalar_lea.sflag [#allocation5], %s270
          %s272 = sand.u32 %s67, 1
          %s273 = smul.addr %s272, 4
          %s274 = scalar_lea.vmem [#allocation6], %s273
          %276 = dma.done %s271, 64
        $region48: #{tpu_custom_call.1} parent=43 // pred_fallthru
          _
      $region44: #{tpu_custom_call.1} parent=5 // pred_fallthru
        _
    $region6: #{tpu_custom_call.1} parent=1 // loop_footer
      %s17 = sadd.s32 1, %s13
    $region7: #{tpu_custom_call.1} parent=1 // loop_footer_branch
      %12 = sbr.rel target = $region3
    $region8: #{tpu_custom_call.1} parent=1 // loop_exit
      _
    %277 = vsyncpa [#allocation4], 1
    %s278 = scalar_lea.sflag [#allocation4], 1
    %279 = vsyncpa %s278, 1
    %280 = vsyncpa [#allocation5], 1
    %s281 = scalar_lea.sflag [#allocation5], 1
    %282 = vsyncpa %s281, 1

</llo_original>
